<compile_context>
chip_gen: v7x
topology: tpu7x:2x2x1
jax: 0.10.0
libtpu: 0.0.40
codegen_flags: <defaults>
</compile_context>

<pallas_src>
import functools

import jax
import jax.numpy as jnp
from jax.experimental import pallas as pl
from jax.experimental.pallas import tpu as pltpu


def _round_up(x, m):
    return ((x + m - 1) // m) * m


def _pad2(a, rows, cols, dtype=None):
    dtype = a.dtype if dtype is None else dtype
    out = jnp.zeros((rows, cols), dtype)
    return out.at[: a.shape[0], : a.shape[1]].set(a.astype(dtype))


def _gin_layer_kernel(*refs, apply_final):
    """One GINConv layer (optionally fused with the final Linear).

    Grid = (row tile i ['parallel'], adj column tile k ['arbitrary', innermost]).
      acc[i] += adj[i, k] @ x[k]                      (bf16 MXU, f32 accumulate)
      at k == last:
        h   = acc + (1 + eps) * x[i]
        h   = relu(h @ W1 + b1); h = relu(h @ W2 + b2)
        out = h  (then @ Wf + bf if apply_final)
    """
    if apply_final:
        (adj_ref, xk_ref, xi_ref, w1_ref, b1_ref, w2_ref, b2_ref, eps_ref,
         wf_ref, bf_ref, out_ref, acc_ref) = refs
    else:
        (adj_ref, xk_ref, xi_ref, w1_ref, b1_ref, w2_ref, b2_ref, eps_ref,
         out_ref, acc_ref) = refs
        wf_ref = bf_ref = None

    k = pl.program_id(1)

    @pl.when(k == 0)
    def _init():
        acc_ref[...] = jnp.zeros_like(acc_ref)

    # Neighborhood sum for this row tile: stream adjacency column tiles.
    acc_ref[...] += jnp.dot(adj_ref[...], xk_ref[...].astype(jnp.bfloat16),
                            preferred_element_type=jnp.float32)

    @pl.when(k == pl.num_programs(1) - 1)
    def _finalize():
        scale = 1.0 + eps_ref[...]                                 # (1,1) broadcast
        h = acc_ref[...] + scale * xi_ref[...].astype(jnp.float32)
        h = jnp.maximum(
            jnp.dot(h.astype(jnp.bfloat16), w1_ref[...],
                    preferred_element_type=jnp.float32) + b1_ref[...], 0.0)
        h = jnp.maximum(
            jnp.dot(h.astype(jnp.bfloat16), w2_ref[...],
                    preferred_element_type=jnp.float32) + b2_ref[...], 0.0)
        if apply_final:
            h = jnp.dot(h.astype(jnp.bfloat16), wf_ref[...],
                        preferred_element_type=jnp.float32) + bf_ref[...]
        out_ref[...] = h.astype(out_ref.dtype)


def _gin_layer(adj, x, w1, b1, w2, b2, eps, wf=None, bf=None, *, tm, tk, out_dtype):
    n_pad = adj.shape[0]
    f_in = x.shape[1]
    hid = w1.shape[1]
    apply_final = wf is not None
    f_out = wf.shape[1] if apply_final else hid

    grid = (n_pad // tm, n_pad // tk)
    _const = lambda i, k: (0, 0)

    in_specs = [
        pl.BlockSpec((tm, tk), lambda i, k: (i, k)),    # adj tile
        pl.BlockSpec((tk, f_in), lambda i, k: (k, 0)),  # x rows for contraction
        pl.BlockSpec((tm, f_in), lambda i, k: (i, 0)),  # x rows for self term
        pl.BlockSpec((f_in, hid), _const),              # W1
        pl.BlockSpec((1, hid), _const),                 # b1
        pl.BlockSpec((hid, hid), _const),               # W2
        pl.BlockSpec((1, hid), _const),                 # b2
        pl.BlockSpec((1, 1), _const),                   # eps
    ]
    args = [adj, x, x, w1, b1, w2, b2, eps]
    if apply_final:
        in_specs += [pl.BlockSpec((hid, f_out), _const),
                     pl.BlockSpec((1, f_out), _const)]
        args += [wf, bf]

    flops = (2 * n_pad * n_pad * f_in
             + 2 * n_pad * f_in * hid
             + 2 * n_pad * hid * hid
             + (2 * n_pad * hid * f_out if apply_final else 0))
    bytes_accessed = (adj.size * adj.dtype.itemsize
                      + 2 * x.size * x.dtype.itemsize
                      + n_pad * f_out * jnp.dtype(out_dtype).itemsize
                      + (w1.size + w2.size) * 2 + (b1.size + b2.size) * 4)

    return pl.pallas_call(
        functools.partial(_gin_layer_kernel, apply_final=apply_final),
        out_shape=jax.ShapeDtypeStruct((n_pad, f_out), out_dtype),
        grid=grid,
        in_specs=in_specs,
        out_specs=pl.BlockSpec((tm, f_out), lambda i, k: (i, 0)),
        scratch_shapes=[pltpu.VMEM((tm, f_in), jnp.float32)],
        compiler_params=pltpu.CompilerParams(
            dimension_semantics=("parallel", "arbitrary"),
            vmem_limit_bytes=48 * 1024 * 1024),   # explicit; fits <64 MiB v7x VMEM
        cost_estimate=pl.CostEstimate(flops=int(flops), transcendentals=0,
                                      bytes_accessed=int(bytes_accessed)),
    )(*args)


def gin_encoder_forward(x, edge_index, params):
    """x: (N, in_channels) f32 ; edge_index: (2, E) int32 (row 0 = src, row 1 = dst)."""
    n, in_c = x.shape
    convs = params["convs"]
    num_layers = len(convs)
    hid = params["final_w"].shape[0]
    out_c = params["final_w"].shape[1]

    # Lane-dense padding of all feature dims.
    hid_pad = _round_up(hid, 128)
    in_pad = _round_up(in_c, 128)
    out_pad = _round_up(out_c, 128)

    # Row / contraction tiles for the adjacency matmul, adapted to graph size.
    tile = 512 if n >= 512 else _round_up(max(n, 1), 128)
    n_pad = _round_up(n, tile)
    tm = tk = tile

    # Dense padded adjacency with edge multiplicity (agg = adj @ x).
    src, dst = edge_index[0], edge_index[1]
    adj = jnp.zeros((n_pad, n_pad), jnp.float32).at[dst, src].add(1.0)
    adj = adj.astype(jnp.bfloat16)   # exact while edge multiplicity <= 256

    h = _pad2(x, n_pad, in_pad, jnp.float32)

    for l, c in enumerate(convs):
        is_last = l == num_layers - 1
        f_in = h.shape[1]
        w1 = _pad2(c["w1"], f_in, hid_pad, jnp.bfloat16)
        b1 = _pad2(c["b1"], 1, hid_pad, jnp.float32)
        w2 = _pad2(c["w2"], hid_pad, hid_pad, jnp.bfloat16)
        b2 = _pad2(c["b2"], 1, hid_pad, jnp.float32)
        eps = jnp.reshape(c["eps"], (1, 1)).astype(jnp.float32)
        if is_last:
            wf = _pad2(params["final_w"], hid_pad, out_pad, jnp.bfloat16)
            bf = _pad2(params["final_b"], 1, out_pad, jnp.float32)
            h = _gin_layer(adj, h, w1, b1, w2, b2, eps, wf, bf,
                           tm=tm, tk=tk, out_dtype=jnp.float32)
        else:
            h = _gin_layer(adj, h, w1, b1, w2, b2, eps,
                           tm=tm, tk=tk, out_dtype=jnp.bfloat16)

    return h[:n, :out_c]


def init_gin_encoder_params(key, in_channels, hidden_channels, out_channels, num_layers=3):
    """Deterministic synthetic parameters mirroring GINEncoder shapes."""
    convs = []
    f_in = in_channels
    for _ in range(num_layers):
        key, k1, k2, k3, k4 = jax.random.split(key, 5)
        w1 = 0.1 * jax.random.normal(k1, (f_in, hidden_channels), dtype=jnp.float32)
        b1 = 0.1 * jax.random.normal(k2, (1, hidden_channels), dtype=jnp.float32)
        w2 = 0.1 * jax.random.normal(k3, (hidden_channels, hidden_channels), dtype=jnp.float32)
        b2 = 0.1 * jax.random.normal(k4, (1, hidden_channels), dtype=jnp.float32)
        convs.append(dict(w1=w1, b1=b1, w2=w2, b2=b2,
                          eps=jnp.float32(0.0)))        # train_eps=True, init 0
        f_in = hidden_channels
    key, kf1, kf2 = jax.random.split(key, 3)
    final_w = 0.1 * jax.random.normal(kf1, (hidden_channels, out_channels), dtype=jnp.float32)
    final_b = 0.1 * jax.random.normal(kf2, (1, out_channels), dtype=jnp.float32)
    return dict(convs=convs, final_w=final_w, final_b=final_b)


def _reference_forward(x, edge_index, params):
    """Pure-JAX f32 reference for correctness checking."""
    n = x.shape[0]
    src, dst = edge_index[0], edge_index[1]
    adj = jnp.zeros((n, n), dtype=jnp.float32).at[dst, src].add(1.0)
    for c in params["convs"]:
        h = adj @ x + (1.0 + c["eps"]) * x
        h = jnp.maximum(h @ c["w1"] + c["b1"], 0.0)
        h = jnp.maximum(h @ c["w2"] + c["b2"], 0.0)
        x = h
    return x @ params["final_w"] + params["final_b"]


if __name__ == "__main__":
    key = jax.random.PRNGKey(0)
    k_x, k_e, k_p = jax.random.split(key, 3)

    N = 16            # nodes
    IN_C = 16         # in_channels
    HID = 32          # hidden_channels
    OUT_C = 8         # out_channels
    E = 40            # edges

    x = jax.random.normal(k_x, (N, IN_C), dtype=jnp.float32)
    edge_index = jax.random.randint(k_e, (2, E), 0, N, dtype=jnp.int32)

    params = init_gin_encoder_params(k_p, IN_C, HID, OUT_C, num_layers=3)

    out = gin_encoder_forward(x, edge_index, params)
    out = jax.block_until_ready(out)

    assert out.shape == (N, OUT_C), out.shape
    assert jnp.all(jnp.isfinite(out))

    ref = _reference_forward(x, edge_index, params)
    # bf16 MXU inputs (f32 accumulate) -> loosened tolerance vs the f32 reference.
    assert jnp.allclose(out, ref, atol=5e-2, rtol=5e-2), float(jnp.max(jnp.abs(out - ref)))

    print("KERNEL_OK")
</pallas_src>

<mosaic_0001>
module attributes {stable_mosaic.version = 11 : i64} {
  func.func @_gin_layer_kernel(%arg0: i32, %arg1: i32, %arg2: memref<128x128xbf16, #tpu.memory_space<vmem>>, %arg3: memref<128x128xf32, #tpu.memory_space<vmem>>, %arg4: memref<128x128xf32, #tpu.memory_space<vmem>>, %arg5: memref<128x128xbf16, #tpu.memory_space<vmem>>, %arg6: memref<1x128xf32, #tpu.memory_space<vmem>>, %arg7: memref<128x128xbf16, #tpu.memory_space<vmem>>, %arg8: memref<1x128xf32, #tpu.memory_space<vmem>>, %arg9: memref<1x1xf32, #tpu.memory_space<vmem>>, %arg10: memref<128x128xbf16, #tpu.memory_space<vmem>>, %arg11: memref<128x128xf32, #tpu.memory_space<vmem>>) attributes {dimension_semantics = [#tpu.dimension_semantics<parallel>, #tpu.dimension_semantics<arbitrary>], iteration_bounds = array<i64: 1, 1>, scalar_prefetch = 0 : i64, scratch_operands = 1 : i64, tpu.core_type = #tpu.core_type<tc>, window_params = [{transform_indices = @transform_0, window_bounds = array<i64: 128, 128>}, {transform_indices = @transform_1, window_bounds = array<i64: 128, 128>}, {transform_indices = @transform_2, window_bounds = array<i64: 128, 128>}, {pipeline_mode = #tpu.pipeline_mode<synchronous>, transform_indices = @transform_3, window_bounds = array<i64: 128, 128>}, {pipeline_mode = #tpu.pipeline_mode<synchronous>, transform_indices = @transform_4, window_bounds = array<i64: 1, 128>}, {pipeline_mode = #tpu.pipeline_mode<synchronous>, transform_indices = @transform_5, window_bounds = array<i64: 128, 128>}, {pipeline_mode = #tpu.pipeline_mode<synchronous>, transform_indices = @transform_6, window_bounds = array<i64: 1, 128>}, {pipeline_mode = #tpu.pipeline_mode<synchronous>, transform_indices = @transform_7, window_bounds = array<i64: 1, 1>}, {transform_indices = @transform_8, window_bounds = array<i64: 128, 128>}]} {
    %c0_i32 = arith.constant 0 : i32
    %0 = arith.cmpi eq, %arg1, %c0_i32 : i32
    %1 = arith.extui %0 : i1 to i32
    %c0_i32_0 = arith.constant 0 : i32
    %2 = arith.cmpi ne, %1, %c0_i32_0 : i32
    scf.if %2 {
      %cst_10 = arith.constant 0.000000e+00 : f32
      %13 = vector.broadcast %cst_10 : f32 to vector<128x128xf32>
      %c0_11 = arith.constant 0 : index
      %c0_12 = arith.constant 0 : index
      %14 = vector.load %arg11[%c0_11, %c0_12] : memref<128x128xf32, #tpu.memory_space<vmem>>, vector<128x128xf32>
      tpu.vector_store %arg11[%c0_11, %c0_12], %13 {strides = array<i32>} : memref<128x128xf32, #tpu.memory_space<vmem>>, vector<128x128xf32>,
    } else {
    }
    %c0 = arith.constant 0 : index
    %c0_1 = arith.constant 0 : index
    %3 = vector.load %arg11[%c0, %c0_1] : memref<128x128xf32, #tpu.memory_space<vmem>>, vector<128x128xf32>
    %c0_2 = arith.constant 0 : index
    %c0_3 = arith.constant 0 : index
    %4 = vector.load %arg2[%c0_2, %c0_3] : memref<128x128xbf16, #tpu.memory_space<vmem>>, vector<128x128xbf16>
    %c0_4 = arith.constant 0 : index
    %c0_5 = arith.constant 0 : index
    %5 = vector.load %arg3[%c0_4, %c0_5] : memref<128x128xf32, #tpu.memory_space<vmem>>, vector<128x128xf32>
    %6 = arith.truncf %5 : vector<128x128xf32> to vector<128x128xbf16>
    %cst = arith.constant dense<0.000000e+00> : vector<128x128xf32>
    %7 = tpu.matmul %4, %6, %cst {dimension_numbers = #tpu.dot_dimension_numbers<[1], [0], [0], [1], [0, 0, 1, 1], [], []>} : vector<128x128xbf16>, vector<128x128xbf16>, vector<128x128xf32> -> vector<128x128xf32>
    %8 = arith.addf %3, %7 : vector<128x128xf32>
    %c0_6 = arith.constant 0 : index
    %c0_7 = arith.constant 0 : index
    %9 = vector.load %arg11[%c0_6, %c0_7] : memref<128x128xf32, #tpu.memory_space<vmem>>, vector<128x128xf32>
    tpu.vector_store %arg11[%c0_6, %c0_7], %8 {strides = array<i32>} : memref<128x128xf32, #tpu.memory_space<vmem>>, vector<128x128xf32>,
    %c0_i32_8 = arith.constant 0 : i32
    %10 = arith.cmpi eq, %arg1, %c0_i32_8 : i32
    %11 = arith.extui %10 : i1 to i32
    %c0_i32_9 = arith.constant 0 : i32
    %12 = arith.cmpi ne, %11, %c0_i32_9 : i32
    scf.if %12 {
      %c0_10 = arith.constant 0 : index
      %c0_11 = arith.constant 0 : index
      %13 = vector.load %arg9[%c0_10, %c0_11] : memref<1x1xf32, #tpu.memory_space<vmem>>, vector<1x1xf32>
      %cst_12 = arith.constant 1.000000e+00 : f32
      %14 = vector.broadcast %cst_12 : f32 to vector<1x1xf32>
      %15 = arith.addf %14, %13 : vector<1x1xf32>
      %c0_13 = arith.constant 0 : index
      %c0_14 = arith.constant 0 : index
      %16 = vector.load %arg11[%c0_13, %c0_14] : memref<128x128xf32, #tpu.memory_space<vmem>>, vector<128x128xf32>
      %c0_15 = arith.constant 0 : index
      %c0_16 = arith.constant 0 : index
      %17 = vector.load %arg4[%c0_15, %c0_16] : memref<128x128xf32, #tpu.memory_space<vmem>>, vector<128x128xf32>
      %18 = vector.broadcast %15 : vector<1x1xf32> to vector<128x128xf32>
      %19 = arith.mulf %18, %17 : vector<128x128xf32>
      %20 = arith.addf %16, %19 : vector<128x128xf32>
      %21 = arith.truncf %20 : vector<128x128xf32> to vector<128x128xbf16>
      %c0_17 = arith.constant 0 : index
      %c0_18 = arith.constant 0 : index
      %22 = vector.load %arg5[%c0_17, %c0_18] : memref<128x128xbf16, #tpu.memory_space<vmem>>, vector<128x128xbf16>
      %cst_19 = arith.constant dense<0.000000e+00> : vector<128x128xf32>
      %23 = tpu.matmul %21, %22, %cst_19 {dimension_numbers = #tpu.dot_dimension_numbers<[1], [0], [0], [1], [0, 0, 1, 1], [], []>} : vector<128x128xbf16>, vector<128x128xbf16>, vector<128x128xf32> -> vector<128x128xf32>
      %c0_20 = arith.constant 0 : index
      %c0_21 = arith.constant 0 : index
      %24 = vector.load %arg6[%c0_20, %c0_21] : memref<1x128xf32, #tpu.memory_space<vmem>>, vector<1x128xf32>
      %25 = vector.broadcast %24 : vector<1x128xf32> to vector<128x128xf32>
      %26 = arith.addf %23, %25 : vector<128x128xf32>
      %cst_22 = arith.constant 0.000000e+00 : f32
      %27 = vector.broadcast %cst_22 : f32 to vector<128x128xf32>
      %28 = arith.maximumf %26, %27 : vector<128x128xf32>
      %29 = arith.truncf %28 : vector<128x128xf32> to vector<128x128xbf16>
      %c0_23 = arith.constant 0 : index
      %c0_24 = arith.constant 0 : index
      %30 = vector.load %arg7[%c0_23, %c0_24] : memref<128x128xbf16, #tpu.memory_space<vmem>>, vector<128x128xbf16>
      %cst_25 = arith.constant dense<0.000000e+00> : vector<128x128xf32>
      %31 = tpu.matmul %29, %30, %cst_25 {dimension_numbers = #tpu.dot_dimension_numbers<[1], [0], [0], [1], [0, 0, 1, 1], [], []>} : vector<128x128xbf16>, vector<128x128xbf16>, vector<128x128xf32> -> vector<128x128xf32>
      %c0_26 = arith.constant 0 : index
      %c0_27 = arith.constant 0 : index
      %32 = vector.load %arg8[%c0_26, %c0_27] : memref<1x128xf32, #tpu.memory_space<vmem>>, vector<1x128xf32>
      %33 = vector.broadcast %32 : vector<1x128xf32> to vector<128x128xf32>
      %34 = arith.addf %31, %33 : vector<128x128xf32>
      %cst_28 = arith.constant 0.000000e+00 : f32
      %35 = vector.broadcast %cst_28 : f32 to vector<128x128xf32>
      %36 = arith.maximumf %34, %35 : vector<128x128xf32>
      %37 = arith.truncf %36 : vector<128x128xf32> to vector<128x128xbf16>
      %c0_29 = arith.constant 0 : index
      %c0_30 = arith.constant 0 : index
      %38 = vector.load %arg10[%c0_29, %c0_30] : memref<128x128xbf16, #tpu.memory_space<vmem>>, vector<128x128xbf16>
      tpu.vector_store %arg10[%c0_29, %c0_30], %37 {strides = array<i32>} : memref<128x128xbf16, #tpu.memory_space<vmem>>, vector<128x128xbf16>,
    } else {
    }
    return
  }
  func.func @transform_0(%arg0: i32, %arg1: i32) -> (i32, i32) {
    %c0_i32 = arith.constant 0 : i32
    return %arg0, %arg1 : i32, i32
  }
  func.func @transform_1(%arg0: i32, %arg1: i32) -> (i32, i32) {
    %c0_i32 = arith.constant 0 : i32
    %c0_i32_0 = arith.constant 0 : i32
    return %arg1, %c0_i32 : i32, i32
  }
  func.func @transform_2(%arg0: i32, %arg1: i32) -> (i32, i32) {
    %c0_i32 = arith.constant 0 : i32
    %c0_i32_0 = arith.constant 0 : i32
    return %arg0, %c0_i32 : i32, i32
  }
  func.func @transform_3(%arg0: i32, %arg1: i32) -> (i32, i32) {
    %c0_i32 = arith.constant 0 : i32
    %c0_i32_0 = arith.constant 0 : i32
    %c0_i32_1 = arith.constant 0 : i32
    return %c0_i32, %c0_i32_0 : i32, i32
  }
  func.func @transform_4(%arg0: i32, %arg1: i32) -> (i32, i32) {
    %c0_i32 = arith.constant 0 : i32
    %c0_i32_0 = arith.constant 0 : i32
    %c0_i32_1 = arith.constant 0 : i32
    return %c0_i32, %c0_i32_0 : i32, i32
  }
  func.func @transform_5(%arg0: i32, %arg1: i32) -> (i32, i32) {
    %c0_i32 = arith.constant 0 : i32
    %c0_i32_0 = arith.constant 0 : i32
    %c0_i32_1 = arith.constant 0 : i32
    return %c0_i32, %c0_i32_0 : i32, i32
  }
  func.func @transform_6(%arg0: i32, %arg1: i32) -> (i32, i32) {
    %c0_i32 = arith.constant 0 : i32
    %c0_i32_0 = arith.constant 0 : i32
    %c0_i32_1 = arith.constant 0 : i32
    return %c0_i32, %c0_i32_0 : i32, i32
  }
  func.func @transform_7(%arg0: i32, %arg1: i32) -> (i32, i32) {
    %c0_i32 = arith.constant 0 : i32
    %c0_i32_0 = arith.constant 0 : i32
    %c0_i32_1 = arith.constant 0 : i32
    return %c0_i32, %c0_i32_0 : i32, i32
  }
  func.func @transform_8(%arg0: i32, %arg1: i32) -> (i32, i32) {
    %c0_i32 = arith.constant 0 : i32
    %c0_i32_0 = arith.constant 0 : i32
    return %arg0, %c0_i32 : i32, i32
  }
}

</mosaic_0001>

<llo_original>
// kernel: tpu_custom_call.1
$region0: #{tpu_custom_call.1}
  #allocation0 [shape = 'u32[]', space=smem, size = 0x4, offset = 0x4, fixed_abs, tag = 'smem constant byte address 0x4 - core index']
  #allocation1 [shape = 'u32[144,128]{1,0:T(1,128)}', space=vmem, size = 0x12000, scoped, tag = 'internal scratch']
  #allocation2 [shape = 'f32[128,128]{1,0:T(8,128)}', space=vmem, size = 0x10000, scoped, tag = 'scratch operand']
  #allocation3 [shape = 'f32[1,1]{1,0:T(1,128)S(1)}', space=vmem, size = 0x200, scoped, tag = 'scoped memory for tpu_custom_call.1']
  %s0 = inlined_call_operand.hbm [shape: bf16[128,128], index: 0, kind: input, shape index: {}]
  %s1 = inlined_call_operand.hbm [shape: f32[128,128], index: 1, kind: input, shape index: {}]
  %s2 = inlined_call_operand.hbm [shape: f32[128,128], index: 2, kind: input, shape index: {}]
  %s3 = inlined_call_operand.hbm [shape: bf16[128,128], index: 3, kind: input, shape index: {}]
  %s4 = inlined_call_operand.vmem [shape: f32[1,128], index: 4, kind: input, shape index: {}]
  %s5 = inlined_call_operand.hbm [shape: bf16[128,128], index: 5, kind: input, shape index: {}]
  %s6 = inlined_call_operand.vmem [shape: f32[1,128], index: 6, kind: input, shape index: {}]
  %s7 = inlined_call_operand.<no memory space> [shape: f32[1,1], index: 7, kind: input, shape index: {}]
  %s8 = inlined_call_operand.hbm [shape: bf16[128,128], index: 8, kind: output, shape index: {}]
  %s9 = sld [smem:[#allocation0]]
  $region70: #{tpu_custom_call.1} parent=0
    _
  %s11 = ssub.s32 1, %s9
  %s12 = scalar_select 0, %s11, %s9
  %v13 = vstv %s7
  %14 = vst [vmem:[#allocation3] sm:$0x1] %v13
  $region1: #{tpu_custom_call.1} parent=0
    #allocation4 [shape = 'u8[32768]{0}', space=vmem, size = 0x8000, scoped, tag = 'input window, operand 0, single buffered']
    #allocation5 [shape = 's32[1]{0}', space=sflag, size = 0x4, scoped, tag = 'scoped memory for tpu_custom_call.1']
    #allocation6 [shape = 's32[1]{0}', space=sflag, size = 0x4, scoped, tag = 'scoped memory for tpu_custom_call.1']
    #allocation7 [shape = 'u8[65536]{0}', space=vmem, size = 0x10000, scoped, tag = 'input window, operand 1, single buffered']
    #allocation8 [shape = 's32[1]{0}', space=sflag, size = 0x4, scoped, tag = 'scoped memory for tpu_custom_call.1']
    #allocation9 [shape = 'u8[65536]{0}', space=vmem, size = 0x10000, scoped, tag = 'input window, operand 2, single buffered']
    #allocation10 [shape = 'u8[32768]{0}', space=vmem, size = 0x8000, scoped, tag = 'input window, operand 3, single buffered']
    #allocation11 [shape = 's32[1]{0}', space=sflag, size = 0x4, scoped, tag = 'scoped memory for tpu_custom_call.1']
    #allocation12 [shape = 'u8[32768]{0}', space=vmem, size = 0x8000, scoped, tag = 'input window, operand 5, single buffered']
    #allocation13 [shape = 'u8[32768]{0}', space=vmem, size = 0x8000, scoped, tag = 'output window, operand 0, single buffered']
    %15 = vsyncpa [#allocation5], 0
    %16 = vsyncpa [#allocation8], 0
    %17 = vsyncpa [#allocation11], 0
    %18 = vsyncpa [#allocation6], 0
    // Predicated region
    $region2: #{tpu_custom_call.1} parent=1 // pred_check
      _
    $region3: #{tpu_custom_call.1} parent=1 // pred_check_branch
      %20 = sbr.rel (0) target = $region5
    $region4: #{tpu_custom_call.1} parent=1 // pred_region
      %s22 = ssub.s32 1024, 1024
      %23 = vsyncadd [#allocation5], %s22
      %s24 = sshll.u32 [#allocation4], 4
      %s25 = int_to_ptr.vmem [resolvable:$true] %s24
      %30 = dma.hbm_to_vmem [thread:$0]  %s0, 1024, %s25, [#allocation5], 64, 64, 4
    $region5: #{tpu_custom_call.1} parent=1 // pred_fallthru
      _
    // Predicated region
    $region6: #{tpu_custom_call.1} parent=1 // pred_check
      _
    $region7: #{tpu_custom_call.1} parent=1 // pred_check_branch
      %32 = sbr.rel (0) target = $region9
    $region8: #{tpu_custom_call.1} parent=1 // pred_region
      %s34 = ssub.s32 2048, 2048
      %35 = vsyncadd [#allocation8], %s34
      %s36 = sshll.u32 [#allocation7], 4
      %s37 = int_to_ptr.vmem [resolvable:$true] %s36
      %42 = dma.hbm_to_vmem [thread:$0]  %s1, 2048, %s37, [#allocation8], 128, 128, 8
    $region9: #{tpu_custom_call.1} parent=1 // pred_fallthru
      _
    // Predicated region
    $region10: #{tpu_custom_call.1} parent=1 // pred_check
      _
    $region11: #{tpu_custom_call.1} parent=1 // pred_check_branch
      %44 = sbr.rel (0) target = $region13
    $region12: #{tpu_custom_call.1} parent=1 // pred_region
      %s46 = ssub.s32 2048, 2048
      %47 = vsyncadd [#allocation8], %s46
      %s48 = sshll.u32 [#allocation9], 4
      %s49 = int_to_ptr.vmem [resolvable:$true] %s48
      %54 = dma.hbm_to_vmem [thread:$0]  %s2, 2048, %s49, [#allocation8], 128, 128, 8
    $region13: #{tpu_custom_call.1} parent=1 // pred_fallthru
      _
    // Predicated region
    $region14: #{tpu_custom_call.1} parent=1 // pred_check
      _
    $region15: #{tpu_custom_call.1} parent=1 // pred_check_branch
      %56 = sbr.rel (0) target = $region17
    $region16: #{tpu_custom_call.1} parent=1 // pred_region
      %s58 = ssub.s32 1024, 1024
      %59 = vsyncadd [#allocation11], %s58
      %s60 = sshll.u32 [#allocation10], 4
      %s61 = int_to_ptr.vmem [resolvable:$true] %s60
      %66 = dma.hbm_to_vmem [thread:$0]  %s3, 1024, %s61, [#allocation11], 64, 64, 4
    $region17: #{tpu_custom_call.1} parent=1 // pred_fallthru
      _
    // Predicated region
    $region18: #{tpu_custom_call.1} parent=1 // pred_check
      _
    $region19: #{tpu_custom_call.1} parent=1 // pred_check_branch
      %68 = sbr.rel (0) target = $region21
    $region20: #{tpu_custom_call.1} parent=1 // pred_region
      _
    $region21: #{tpu_custom_call.1} parent=1 // pred_fallthru
      _
    // Predicated region
    $region22: #{tpu_custom_call.1} parent=1 // pred_check
      _
    $region23: #{tpu_custom_call.1} parent=1 // pred_check_branch
      %70 = sbr.rel (0) target = $region25
    $region24: #{tpu_custom_call.1} parent=1 // pred_region
      %s72 = ssub.s32 1024, 1024
      %73 = vsyncadd [#allocation11], %s72
      %s74 = sshll.u32 [#allocation12], 4
      %s75 = int_to_ptr.vmem [resolvable:$true] %s74
      %80 = dma.hbm_to_vmem [thread:$0]  %s5, 1024, %s75, [#allocation11], 64, 64, 4
    $region25: #{tpu_custom_call.1} parent=1 // pred_fallthru
      _
    // Predicated region
    $region26: #{tpu_custom_call.1} parent=1 // pred_check
      _
    $region27: #{tpu_custom_call.1} parent=1 // pred_check_branch
      %82 = sbr.rel (0) target = $region29
    $region28: #{tpu_custom_call.1} parent=1 // pred_region
      _
    $region29: #{tpu_custom_call.1} parent=1 // pred_fallthru
      _
    // Predicated region
    $region30: #{tpu_custom_call.1} parent=1 // pred_check
      _
    $region31: #{tpu_custom_call.1} parent=1 // pred_check_branch
      %84 = sbr.rel (0) target = $region33
    $region32: #{tpu_custom_call.1} parent=1 // pred_region
      _
    $region33: #{tpu_custom_call.1} parent=1 // pred_fallthru
      _
    // Predicated region
    $region34: #{tpu_custom_call.1} parent=1 // pred_check
      _
    $region35: #{tpu_custom_call.1} parent=1 // pred_check_branch
      %86 = sbr.rel (0) target = $region37
    $region36: #{tpu_custom_call.1} parent=1 // pred_region
      %87 = dma.done [#allocation5], 1024
    $region37: #{tpu_custom_call.1} parent=1 // pred_fallthru
      _
    // Predicated region
    $region38: #{tpu_custom_call.1} parent=1 // pred_check
      _
    $region39: #{tpu_custom_call.1} parent=1 // pred_check_branch
      %89 = sbr.rel (0) target = $region41
    $region40: #{tpu_custom_call.1} parent=1 // pred_region
      %90 = dma.done [#allocation8], 2048
    $region41: #{tpu_custom_call.1} parent=1 // pred_fallthru
      _
    // Predicated region
    $region42: #{tpu_custom_call.1} parent=1 // pred_check
      _
    $region43: #{tpu_custom_call.1} parent=1 // pred_check_branch
      %92 = sbr.rel (0) target = $region45
    $region44: #{tpu_custom_call.1} parent=1 // pred_region
      %93 = dma.done [#allocation8], 2048
    $region45: #{tpu_custom_call.1} parent=1 // pred_fallthru
      _
    // Predicated region
    $region46: #{tpu_custom_call.1} parent=1 // pred_check
      _
    $region47: #{tpu_custom_call.1} parent=1 // pred_check_branch
      %95 = sbr.rel (0) target = $region49
    $region48: #{tpu_custom_call.1} parent=1 // pred_region
      %96 = dma.done [#allocation11], 1024
    $region49: #{tpu_custom_call.1} parent=1 // pred_fallthru
      _
    // Predicated region
    $region50: #{tpu_custom_call.1} parent=1 // pred_check
      _
    $region51: #{tpu_custom_call.1} parent=1 // pred_check_branch
      %98 = sbr.rel (0) target = $region53
    $region52: #{tpu_custom_call.1} parent=1 // pred_region
      %99 = dma.done [#allocation11], 1024
    $region53: #{tpu_custom_call.1} parent=1 // pred_fallthru
      _
    %p101 = scmp.eq.s32.totalorder 0, 0
    // Predicated region
    $region54: #{tpu_custom_call.1} parent=1 // pred_check
      %p102 = pneg %p101
    $region55: #{tpu_custom_call.1} parent=1 // pred_check_branch
      %104 = sbr.rel (%p102) target = $region57
    $region56: #{tpu_custom_call.1} parent=1 // pred_region
      %105 = vst [vmem:[#allocation2] sm:$0xff] 0.0
      %106 = vst [vmem:[#allocation2 + $0x8] sm:$0xff] 0.0
      %107 = vst [vmem:[#allocation2 + $0x10] sm:$0xff] 0.0
      %108 = vst [vmem:[#allocation2 + $0x18] sm:$0xff] 0.0
      %109 = vst [vmem:[#allocation2 + $0x20] sm:$0xff] 0.0
      %110 = vst [vmem:[#allocation2 + $0x28] sm:$0xff] 0.0
      %111 = vst [vmem:[#allocation2 + $0x30] sm:$0xff] 0.0
      %112 = vst [vmem:[#allocation2 + $0x38] sm:$0xff] 0.0
      %113 = vst [vmem:[#allocation2 + $0x40] sm:$0xff] 0.0
      %114 = vst [vmem:[#allocation2 + $0x48] sm:$0xff] 0.0
      %115 = vst [vmem:[#allocation2 + $0x50] sm:$0xff] 0.0
      %116 = vst [vmem:[#allocation2 + $0x58] sm:$0xff] 0.0
      %117 = vst [vmem:[#allocation2 + $0x60] sm:$0xff] 0.0
      %118 = vst [vmem:[#allocation2 + $0x68] sm:$0xff] 0.0
      %119 = vst [vmem:[#allocation2 + $0x70] sm:$0xff] 0.0
      %120 = vst [vmem:[#allocation2 + $0x78] sm:$0xff] 0.0
    $region57: #{tpu_custom_call.1} parent=1 // pred_fallthru
      _
    %v121 = vld [vmem:[#allocation2] sm:$0xff]
    %v122 = vld [vmem:[#allocation2 + $0x8] sm:$0xff]
    %v123 = vld [vmem:[#allocation2 + $0x10] sm:$0xff]
    %v124 = vld [vmem:[#allocation2 + $0x18] sm:$0xff]
    %v125 = vld [vmem:[#allocation2 + $0x20] sm:$0xff]
    %v126 = vld [vmem:[#allocation2 + $0x28] sm:$0xff]
    %v127 = vld [vmem:[#allocation2 + $0x30] sm:$0xff]
    %v128 = vld [vmem:[#allocation2 + $0x38] sm:$0xff]
    %v129 = vld [vmem:[#allocation2 + $0x40] sm:$0xff]
    %v130 = vld [vmem:[#allocation2 + $0x48] sm:$0xff]
    %v131 = vld [vmem:[#allocation2 + $0x50] sm:$0xff]
    %v132 = vld [vmem:[#allocation2 + $0x58] sm:$0xff]
    %v133 = vld [vmem:[#allocation2 + $0x60] sm:$0xff]
    %v134 = vld [vmem:[#allocation2 + $0x68] sm:$0xff]
    %v135 = vld [vmem:[#allocation2 + $0x70] sm:$0xff]
    %v136 = vld [vmem:[#allocation2 + $0x78] sm:$0xff]
    %v137 = vld [vmem:[#allocation4] sm:$0xf]
    %v138 = vld [vmem:[#allocation4 + $0x4] sm:$0xf]
    %v139 = vld [vmem:[#allocation4 + $0x8] sm:$0xf]
    %v140 = vld [vmem:[#allocation4 + $0xc] sm:$0xf]
    %v141 = vld [vmem:[#allocation4 + $0x10] sm:$0xf]
    %v142 = vld [vmem:[#allocation4 + $0x14] sm:$0xf]
    %v143 = vld [vmem:[#allocation4 + $0x18] sm:$0xf]
    %v144 = vld [vmem:[#allocation4 + $0x1c] sm:$0xf]
    %v145 = vld [vmem:[#allocation4 + $0x20] sm:$0xf]
    %v146 = vld [vmem:[#allocation4 + $0x24] sm:$0xf]
    %v147 = vld [vmem:[#allocation4 + $0x28] sm:$0xf]
    %v148 = vld [vmem:[#allocation4 + $0x2c] sm:$0xf]
    %v149 = vld [vmem:[#allocation4 + $0x30] sm:$0xf]
    %v150 = vld [vmem:[#allocation4 + $0x34] sm:$0xf]
    %v151 = vld [vmem:[#allocation4 + $0x38] sm:$0xf]
    %v152 = vld [vmem:[#allocation4 + $0x3c] sm:$0xf]
    %v153 = vld [vmem:[#allocation7] sm:$0xff]
    %v154 = vld [vmem:[#allocation7 + $0x8] sm:$0xff]
    %v155 = vld [vmem:[#allocation7 + $0x10] sm:$0xff]
    %v156 = vld [vmem:[#allocation7 + $0x18] sm:$0xff]
    %v157 = vld [vmem:[#allocation7 + $0x20] sm:$0xff]
    %v158 = vld [vmem:[#allocation7 + $0x28] sm:$0xff]
    %v159 = vld [vmem:[#allocation7 + $0x30] sm:$0xff]
    %v160 = vld [vmem:[#allocation7 + $0x38] sm:$0xff]
    %v161 = vld [vmem:[#allocation7 + $0x40] sm:$0xff]
    %v162 = vld [vmem:[#allocation7 + $0x48] sm:$0xff]
    %v163 = vld [vmem:[#allocation7 + $0x50] sm:$0xff]
    %v164 = vld [vmem:[#allocation7 + $0x58] sm:$0xff]
    %v165 = vld [vmem:[#allocation7 + $0x60] sm:$0xff]
    %v166 = vld [vmem:[#allocation7 + $0x68] sm:$0xff]
    %v167 = vld [vmem:[#allocation7 + $0x70] sm:$0xff]
    %v168 = vld [vmem:[#allocation7 + $0x78] sm:$0xff]
    %v169 = vpack.c.bf16 %v154, %v153
    %v170 = vpack.c.bf16 %v156, %v155
    %v171 = vpack.c.bf16 %v158, %v157
    %v172 = vpack.c.bf16 %v160, %v159
    %v173 = vpack.c.bf16 %v162, %v161
    %v174 = vpack.c.bf16 %v164, %v163
    %v175 = vpack.c.bf16 %v166, %v165
    %v176 = vpack.c.bf16 %v168, %v167
    %v193 = vunpack.c.l.b16 %v137
    %v194 = vunpack.c.l.b16 %v138
    %v195 = vunpack.c.l.b16 %v139
    %v196 = vunpack.c.l.b16 %v140
    %v197 = vunpack.c.l.b16 %v141
    %v198 = vunpack.c.l.b16 %v142
    %v199 = vunpack.c.l.b16 %v143
    %v200 = vunpack.c.l.b16 %v144
    %v201 = vunpack.c.l.b16 %v145
    %v202 = vunpack.c.l.b16 %v146
    %v203 = vunpack.c.l.b16 %v147
    %v204 = vunpack.c.l.b16 %v148
    %v205 = vunpack.c.l.b16 %v149
    %v206 = vunpack.c.l.b16 %v150
    %v207 = vunpack.c.l.b16 %v151
    %v208 = vunpack.c.l.b16 %v152
    %v209 = vpack.c.b16 %v194, %v193
    %v210 = vpack.c.b16 %v196, %v195
    %v211 = vpack.c.b16 %v198, %v197
    %v212 = vpack.c.b16 %v200, %v199
    %v213 = vpack.c.b16 %v202, %v201
    %v214 = vpack.c.b16 %v204, %v203
    %v215 = vpack.c.b16 %v206, %v205
    %v216 = vpack.c.b16 %v208, %v207
    %225 = vmatprep.subr.bf16.mxu0 0
    %226 = vmatpush1.bf16.msra.mxu0 %v169
    %227 = vmatprep.subr.bf16.mxu0 0
    %228 = vmatpush1.bf16.msra.mxu0 %v170
    %229 = vmatprep.subr.bf16.mxu0 0
    %230 = vmatpush1.bf16.msra.mxu0 %v171
    %231 = vmatprep.subr.bf16.mxu0 0
    %232 = vmatpush1.bf16.msra.mxu0 %v172
    %233 = vmatprep.subr.bf16.mxu0 0
    %234 = vmatpush1.bf16.msra.mxu0 %v173
    %235 = vmatprep.subr.bf16.mxu0 0
    %236 = vmatpush1.bf16.msra.mxu0 %v174
    %237 = vmatprep.subr.bf16.mxu0 0
    %238 = vmatpush1.bf16.msra.mxu0 %v175
    %239 = vmatprep.subr.bf16.mxu0 0
    %240 = vmatpush1.bf16.msra.mxu0 %v176
    %241 = vmatprep.subr.bf16.mxu0 0
    %242 = vmatpush1.bf16.msra.mxu0 0
    %243 = vmatprep.subr.bf16.mxu0 0
    %244 = vmatpush1.bf16.msra.mxu0 0
    %245 = vmatprep.subr.bf16.mxu0 0
    %246 = vmatpush1.bf16.msra.mxu0 0
    %247 = vmatprep.subr.bf16.mxu0 0
    %248 = vmatpush1.bf16.msra.mxu0 0
    %249 = vmatprep.subr.bf16.mxu0 0
    %250 = vmatpush1.bf16.msra.mxu0 0
    %251 = vmatprep.subr.bf16.mxu0 0
    %252 = vmatpush1.bf16.msra.mxu0 0
    %253 = vmatprep.subr.bf16.mxu0 0
    %254 = vmatpush1.bf16.msra.mxu0 0
    %255 = vmatprep.subr.bf16.mxu0 0
    %256 = vmatpush1.bf16.msra.mxu0 0
    %257 = vmatprep.mubr.bf16.mxu0 0
    %258 = vmatmul.mubr.bf16.gmra.mrb[0].mxu0 %v209
    %v259 = vpop.f32.mrb[0].mxu0
    %v260 = vadd.f32 0.0, %v259
    %v261 = vpop.f32.mrb[0].mxu0
    %v262 = vpop.f32.mrb[0].mxu0
    %v263 = vadd.f32 0.0, %v262
    %v264 = vpop.f32.mrb[0].mxu0
    %265 = vmatprep.mubr.bf16.mxu0 0
    %266 = vmatmul.mubr.bf16.gmra.mrb[0].mxu0 %v210
    %v267 = vpop.f32.mrb[0].mxu0
    %v268 = vadd.f32 0.0, %v267
    %v269 = vpop.f32.mrb[0].mxu0
    %v270 = vpop.f32.mrb[0].mxu0
    %v271 = vadd.f32 0.0, %v270
    %v272 = vpop.f32.mrb[0].mxu0
    %273 = vmatprep.mubr.bf16.mxu0 0
    %274 = vmatmul.mubr.bf16.gmra.mrb[0].mxu0 %v211
    %v275 = vpop.f32.mrb[0].mxu0
    %v276 = vadd.f32 0.0, %v275
    %v277 = vpop.f32.mrb[0].mxu0
    %v278 = vpop.f32.mrb[0].mxu0
    %v279 = vadd.f32 0.0, %v278
    %v280 = vpop.f32.mrb[0].mxu0
    %281 = vmatprep.mubr.bf16.mxu0 0
    %282 = vmatmul.mubr.bf16.gmra.mrb[0].mxu0 %v212
    %v283 = vpop.f32.mrb[0].mxu0
    %v284 = vadd.f32 0.0, %v283
    %v285 = vpop.f32.mrb[0].mxu0
    %v286 = vpop.f32.mrb[0].mxu0
    %v287 = vadd.f32 0.0, %v286
    %v288 = vpop.f32.mrb[0].mxu0
    %289 = vmatprep.mubr.bf16.mxu0 0
    %290 = vmatmul.mubr.bf16.gmra.mrb[0].mxu0 %v213
    %v291 = vpop.f32.mrb[0].mxu0
    %v292 = vadd.f32 0.0, %v291
    %v293 = vpop.f32.mrb[0].mxu0
    %v294 = vpop.f32.mrb[0].mxu0
    %v295 = vadd.f32 0.0, %v294
    %v296 = vpop.f32.mrb[0].mxu0
    %297 = vmatprep.mubr.bf16.mxu0 0
    %298 = vmatmul.mubr.bf16.gmra.mrb[0].mxu0 %v214
    %v299 = vpop.f32.mrb[0].mxu0
    %v300 = vadd.f32 0.0, %v299
    %v301 = vpop.f32.mrb[0].mxu0
    %v302 = vpop.f32.mrb[0].mxu0
    %v303 = vadd.f32 0.0, %v302
    %v304 = vpop.f32.mrb[0].mxu0
    %305 = vmatprep.mubr.bf16.mxu0 0
    %306 = vmatmul.mubr.bf16.gmra.mrb[0].mxu0 %v215
    %v307 = vpop.f32.mrb[0].mxu0
    %v308 = vadd.f32 0.0, %v307
    %v309 = vpop.f32.mrb[0].mxu0
    %v310 = vpop.f32.mrb[0].mxu0
    %v311 = vadd.f32 0.0, %v310
    %v312 = vpop.f32.mrb[0].mxu0
    %313 = vmatprep.mubr.bf16.mxu0 0
    %314 = vmatmul.mubr.bf16.gmra.mrb[0].mxu0 %v216
    %v315 = vpop.f32.mrb[0].mxu0
    %v316 = vadd.f32 0.0, %v315
    %v317 = vpop.f32.mrb[0].mxu0
    %v318 = vpop.f32.mrb[0].mxu0
    %v319 = vadd.f32 0.0, %v318
    %v320 = vpop.f32.mrb[0].mxu0
    %321 = vdwg.mxu0
    %v322 = vadd.f32 %v121, %v260
    %v323 = vadd.f32 %v122, %v263
    %v324 = vadd.f32 %v123, %v268
    %v325 = vadd.f32 %v124, %v271
    %v326 = vadd.f32 %v125, %v276
    %v327 = vadd.f32 %v126, %v279
    %v328 = vadd.f32 %v127, %v284
    %v329 = vadd.f32 %v128, %v287
    %v330 = vadd.f32 %v129, %v292
    %v331 = vadd.f32 %v130, %v295
    %v332 = vadd.f32 %v131, %v300
    %v333 = vadd.f32 %v132, %v303
    %v334 = vadd.f32 %v133, %v308
    %v335 = vadd.f32 %v134, %v311
    %v336 = vadd.f32 %v135, %v316
    %v337 = vadd.f32 %v136, %v319
    %338 = vst [vmem:[#allocation2] sm:$0xff] %v322
    %339 = vst [vmem:[#allocation2 + $0x8] sm:$0xff] %v323
    %340 = vst [vmem:[#allocation2 + $0x10] sm:$0xff] %v324
    %341 = vst [vmem:[#allocation2 + $0x18] sm:$0xff] %v325
    %342 = vst [vmem:[#allocation2 + $0x20] sm:$0xff] %v326
    %343 = vst [vmem:[#allocation2 + $0x28] sm:$0xff] %v327
    %344 = vst [vmem:[#allocation2 + $0x30] sm:$0xff] %v328
    %345 = vst [vmem:[#allocation2 + $0x38] sm:$0xff] %v329
    %346 = vst [vmem:[#allocation2 + $0x40] sm:$0xff] %v330
    %347 = vst [vmem:[#allocation2 + $0x48] sm:$0xff] %v331
    %348 = vst [vmem:[#allocation2 + $0x50] sm:$0xff] %v332
    %349 = vst [vmem:[#allocation2 + $0x58] sm:$0xff] %v333
    %350 = vst [vmem:[#allocation2 + $0x60] sm:$0xff] %v334
    %351 = vst [vmem:[#allocation2 + $0x68] sm:$0xff] %v335
    %352 = vst [vmem:[#allocation2 + $0x70] sm:$0xff] %v336
    %353 = vst [vmem:[#allocation2 + $0x78] sm:$0xff] %v337
    // Predicated region
    $region58: #{tpu_custom_call.1} parent=1 // pred_check
      %p354 = pneg %p101
    $region59: #{tpu_custom_call.1} parent=1 // pred_check_branch
      %356 = sbr.rel (%p354) target = $region61
    $region60: #{tpu_custom_call.1} parent=1 // pred_region
      %v357 = vld [vmem:[#allocation3] sm:$0x1]
      %v358 = vadd.f32 %v357, 1.0
      %v359 = vld [vmem:[#allocation2] sm:$0xff]
      %v360 = vld [vmem:[#allocation2 + $0x8] sm:$0xff]
      %v361 = vld [vmem:[#allocation2 + $0x10] sm:$0xff]
      %v362 = vld [vmem:[#allocation2 + $0x18] sm:$0xff]
      %v363 = vld [vmem:[#allocation2 + $0x20] sm:$0xff]
      %v364 = vld [vmem:[#allocation2 + $0x28] sm:$0xff]
      %v365 = vld [vmem:[#allocation2 + $0x30] sm:$0xff]
      %v366 = vld [vmem:[#allocation2 + $0x38] sm:$0xff]
      %v367 = vld [vmem:[#allocation2 + $0x40] sm:$0xff]
      %v368 = vld [vmem:[#allocation2 + $0x48] sm:$0xff]
      %v369 = vld [vmem:[#allocation2 + $0x50] sm:$0xff]
      %v370 = vld [vmem:[#allocation2 + $0x58] sm:$0xff]
      %v371 = vld [vmem:[#allocation2 + $0x60] sm:$0xff]
      %v372 = vld [vmem:[#allocation2 + $0x68] sm:$0xff]
      %v373 = vld [vmem:[#allocation2 + $0x70] sm:$0xff]
      %v374 = vld [vmem:[#allocation2 + $0x78] sm:$0xff]
      %v375 = vld [vmem:[#allocation9] sm:$0xff]
      %v376 = vld [vmem:[#allocation9 + $0x8] sm:$0xff]
      %v377 = vld [vmem:[#allocation9 + $0x10] sm:$0xff]
      %v378 = vld [vmem:[#allocation9 + $0x18] sm:$0xff]
      %v379 = vld [vmem:[#allocation9 + $0x20] sm:$0xff]
      %v380 = vld [vmem:[#allocation9 + $0x28] sm:$0xff]
      %v381 = vld [vmem:[#allocation9 + $0x30] sm:$0xff]
      %v382 = vld [vmem:[#allocation9 + $0x38] sm:$0xff]
      %v383 = vld [vmem:[#allocation9 + $0x40] sm:$0xff]
      %v384 = vld [vmem:[#allocation9 + $0x48] sm:$0xff]
      %v385 = vld [vmem:[#allocation9 + $0x50] sm:$0xff]
      %v386 = vld [vmem:[#allocation9 + $0x58] sm:$0xff]
      %v387 = vld [vmem:[#allocation9 + $0x60] sm:$0xff]
      %v388 = vld [vmem:[#allocation9 + $0x68] sm:$0xff]
      %v389 = vld [vmem:[#allocation9 + $0x70] sm:$0xff]
      %v390 = vld [vmem:[#allocation9 + $0x78] sm:$0xff]
      %v392 = vlaneseq
      %v393 = vshrl.u32 %v392, 7
      %v394 = vsub.s32 0, %v393
      %v395 = vrot.slane %v358, %v394
      %396 = vset.pattern.permute.xlu0 0
      %397 = vperm.xlu0 %396, %v395
      %v398 = vpop.permute.xlu0 %397
      %v400 = vmul.f32 %v398, %v375
      %v401 = vmul.f32 %v398, %v376
      %v402 = vmul.f32 %v398, %v377
      %v403 = vmul.f32 %v398, %v378
      %v404 = vmul.f32 %v398, %v379
      %v405 = vmul.f32 %v398, %v380
      %v406 = vmul.f32 %v398, %v381
      %v407 = vmul.f32 %v398, %v382
      %v408 = vmul.f32 %v398, %v383
      %v409 = vmul.f32 %v398, %v384
      %v410 = vmul.f32 %v398, %v385
      %v411 = vmul.f32 %v398, %v386
      %v412 = vmul.f32 %v398, %v387
      %v413 = vmul.f32 %v398, %v388
      %v414 = vmul.f32 %v398, %v389
      %v415 = vmul.f32 %v398, %v390
      %v416 = vadd.f32 %v359, %v400
      %v417 = vadd.f32 %v360, %v401
      %v418 = vadd.f32 %v361, %v402
      %v419 = vadd.f32 %v362, %v403
      %v420 = vadd.f32 %v363, %v404
      %v421 = vadd.f32 %v364, %v405
      %v422 = vadd.f32 %v365, %v406
      %v423 = vadd.f32 %v366, %v407
      %v424 = vadd.f32 %v367, %v408
      %v425 = vadd.f32 %v368, %v409
      %v426 = vadd.f32 %v369, %v410
      %v427 = vadd.f32 %v370, %v411
      %v428 = vadd.f32 %v371, %v412
      %v429 = vadd.f32 %v372, %v413
      %v430 = vadd.f32 %v373, %v414
      %v431 = vadd.f32 %v374, %v415
      %v432 = vpack.c.bf16 %v417, %v416
      %v433 = vpack.c.bf16 %v419, %v418
      %v434 = vpack.c.bf16 %v421, %v420
      %v435 = vpack.c.bf16 %v423, %v422
      %v436 = vpack.c.bf16 %v425, %v424
      %v437 = vpack.c.bf16 %v427, %v426
      %v438 = vpack.c.bf16 %v429, %v428
      %v439 = vpack.c.bf16 %v431, %v430
      %v440 = vld [vmem:[#allocation10] sm:$0xf]
      %v441 = vld [vmem:[#allocation10 + $0x4] sm:$0xf]
      %v442 = vld [vmem:[#allocation10 + $0x8] sm:$0xf]
      %v443 = vld [vmem:[#allocation10 + $0xc] sm:$0xf]
      %v444 = vld [vmem:[#allocation10 + $0x10] sm:$0xf]
      %v445 = vld [vmem:[#allocation10 + $0x14] sm:$0xf]
      %v446 = vld [vmem:[#allocation10 + $0x18] sm:$0xf]
      %v447 = vld [vmem:[#allocation10 + $0x1c] sm:$0xf]
      %v448 = vld [vmem:[#allocation10 + $0x20] sm:$0xf]
      %v449 = vld [vmem:[#allocation10 + $0x24] sm:$0xf]
      %v450 = vld [vmem:[#allocation10 + $0x28] sm:$0xf]
      %v451 = vld [vmem:[#allocation10 + $0x2c] sm:$0xf]
      %v452 = vld [vmem:[#allocation10 + $0x30] sm:$0xf]
      %v453 = vld [vmem:[#allocation10 + $0x34] sm:$0xf]
      %v454 = vld [vmem:[#allocation10 + $0x38] sm:$0xf]
      %v455 = vld [vmem:[#allocation10 + $0x3c] sm:$0xf]
      %v456 = vld [vmem:[%s4] sm:$0x1]
      %v458 = vlaneseq
      %v459 = vshrl.u32 %v458, 7
      %v460 = vsub.s32 0, %v459
      %v461 = vrot.slane %v456, %v460
      %v479 = vunpack.c.l.b16 %v440
      %v480 = vunpack.c.l.b16 %v441
      %v481 = vunpack.c.l.b16 %v442
      %v482 = vunpack.c.l.b16 %v443
      %v483 = vunpack.c.l.b16 %v444
      %v484 = vunpack.c.l.b16 %v445
      %v485 = vunpack.c.l.b16 %v446
      %v486 = vunpack.c.l.b16 %v447
      %v487 = vunpack.c.l.b16 %v448
      %v488 = vunpack.c.l.b16 %v449
      %v489 = vunpack.c.l.b16 %v450
      %v490 = vunpack.c.l.b16 %v451
      %v491 = vunpack.c.l.b16 %v452
      %v492 = vunpack.c.l.b16 %v453
      %v493 = vunpack.c.l.b16 %v454
      %v494 = vunpack.c.l.b16 %v455
      %v495 = vpack.c.b16 %v480, %v479
      %v496 = vpack.c.b16 %v482, %v481
      %v497 = vpack.c.b16 %v484, %v483
      %v498 = vpack.c.b16 %v486, %v485
      %v499 = vpack.c.b16 %v488, %v487
      %v500 = vpack.c.b16 %v490, %v489
      %v501 = vpack.c.b16 %v492, %v491
      %v502 = vpack.c.b16 %v494, %v493
      %511 = vmatprep.subr.bf16.mxu0 0
      %512 = vmatpush1.bf16.msra.mxu0 %v495
      %513 = vmatprep.subr.bf16.mxu0 0
      %514 = vmatpush1.bf16.msra.mxu0 %v496
      %515 = vmatprep.subr.bf16.mxu0 0
      %516 = vmatpush1.bf16.msra.mxu0 %v497
      %517 = vmatprep.subr.bf16.mxu0 0
      %518 = vmatpush1.bf16.msra.mxu0 %v498
      %519 = vmatprep.subr.bf16.mxu0 0
      %520 = vmatpush1.bf16.msra.mxu0 %v499
      %521 = vmatprep.subr.bf16.mxu0 0
      %522 = vmatpush1.bf16.msra.mxu0 %v500
      %523 = vmatprep.subr.bf16.mxu0 0
      %524 = vmatpush1.bf16.msra.mxu0 %v501
      %525 = vmatprep.subr.bf16.mxu0 0
      %526 = vmatpush1.bf16.msra.mxu0 %v502
      %527 = vmatprep.subr.bf16.mxu0 0
      %528 = vmatpush1.bf16.msra.mxu0 0
      %529 = vmatprep.subr.bf16.mxu0 0
      %530 = vmatpush1.bf16.msra.mxu0 0
      %531 = vmatprep.subr.bf16.mxu0 0
      %532 = vmatpush1.bf16.msra.mxu0 0
      %533 = vmatprep.subr.bf16.mxu0 0
      %534 = vmatpush1.bf16.msra.mxu0 0
      %535 = vmatprep.subr.bf16.mxu0 0
      %536 = vmatpush1.bf16.msra.mxu0 0
      %537 = vmatprep.subr.bf16.mxu0 0
      %538 = vmatpush1.bf16.msra.mxu0 0
      %539 = vmatprep.subr.bf16.mxu0 0
      %540 = vmatpush1.bf16.msra.mxu0 0
      %541 = vmatprep.subr.bf16.mxu0 0
      %542 = vmatpush1.bf16.msra.mxu0 0
      %543 = vmatprep.mubr.bf16.mxu0 0
      %544 = vmatmul.mubr.bf16.gmra.mrb[0].mxu0 %v432
      %v545 = vpop.f32.mrb[0].mxu0
      %v546 = vadd.f32 %v461, %v545
      %v547 = vpop.f32.mrb[0].mxu0
      %v548 = vpop.f32.mrb[0].mxu0
      %v549 = vadd.f32 %v461, %v548
      %v550 = vpop.f32.mrb[0].mxu0
      %551 = vmatprep.mubr.bf16.mxu0 0
      %552 = vmatmul.mubr.bf16.gmra.mrb[0].mxu0 %v433
      %v553 = vpop.f32.mrb[0].mxu0
      %v554 = vadd.f32 %v461, %v553
      %v555 = vpop.f32.mrb[0].mxu0
      %v556 = vpop.f32.mrb[0].mxu0
      %v557 = vadd.f32 %v461, %v556
      %v558 = vpop.f32.mrb[0].mxu0
      %559 = vmatprep.mubr.bf16.mxu0 0
      %560 = vmatmul.mubr.bf16.gmra.mrb[0].mxu0 %v434
      %v561 = vpop.f32.mrb[0].mxu0
      %v562 = vadd.f32 %v461, %v561
      %v563 = vpop.f32.mrb[0].mxu0
      %v564 = vpop.f32.mrb[0].mxu0
      %v565 = vadd.f32 %v461, %v564
      %v566 = vpop.f32.mrb[0].mxu0
      %567 = vmatprep.mubr.bf16.mxu0 0
      %568 = vmatmul.mubr.bf16.gmra.mrb[0].mxu0 %v435
      %v569 = vpop.f32.mrb[0].mxu0
      %v570 = vadd.f32 %v461, %v569
      %v571 = vpop.f32.mrb[0].mxu0
      %v572 = vpop.f32.mrb[0].mxu0
      %v573 = vadd.f32 %v461, %v572
      %v574 = vpop.f32.mrb[0].mxu0
      %575 = vmatprep.mubr.bf16.mxu0 0
      %576 = vmatmul.mubr.bf16.gmra.mrb[0].mxu0 %v436
      %v577 = vpop.f32.mrb[0].mxu0
      %v578 = vadd.f32 %v461, %v577
      %v579 = vpop.f32.mrb[0].mxu0
      %v580 = vpop.f32.mrb[0].mxu0
      %v581 = vadd.f32 %v461, %v580
      %v582 = vpop.f32.mrb[0].mxu0
      %583 = vmatprep.mubr.bf16.mxu0 0
      %584 = vmatmul.mubr.bf16.gmra.mrb[0].mxu0 %v437
      %v585 = vpop.f32.mrb[0].mxu0
      %v586 = vadd.f32 %v461, %v585
      %v587 = vpop.f32.mrb[0].mxu0
      %v588 = vpop.f32.mrb[0].mxu0
      %v589 = vadd.f32 %v461, %v588
      %v590 = vpop.f32.mrb[0].mxu0
      %591 = vmatprep.mubr.bf16.mxu0 0
      %592 = vmatmul.mubr.bf16.gmra.mrb[0].mxu0 %v438
      %v593 = vpop.f32.mrb[0].mxu0
      %v594 = vadd.f32 %v461, %v593
      %v595 = vpop.f32.mrb[0].mxu0
      %v596 = vpop.f32.mrb[0].mxu0
      %v597 = vadd.f32 %v461, %v596
      %v598 = vpop.f32.mrb[0].mxu0
      %599 = vmatprep.mubr.bf16.mxu0 0
      %600 = vmatmul.mubr.bf16.gmra.mrb[0].mxu0 %v439
      %v601 = vpop.f32.mrb[0].mxu0
      %v602 = vadd.f32 %v461, %v601
      %v603 = vpop.f32.mrb[0].mxu0
      %v604 = vpop.f32.mrb[0].mxu0
      %v605 = vadd.f32 %v461, %v604
      %v606 = vpop.f32.mrb[0].mxu0
      %607 = vdwg.mxu0
      %v608 = vmax.f32 %v546, 0.0
      %v609 = vmax.f32 %v549, 0.0
      %v610 = vmax.f32 %v554, 0.0
      %v611 = vmax.f32 %v557, 0.0
      %v612 = vmax.f32 %v562, 0.0
      %v613 = vmax.f32 %v565, 0.0
      %v614 = vmax.f32 %v570, 0.0
      %v615 = vmax.f32 %v573, 0.0
      %v616 = vmax.f32 %v578, 0.0
      %v617 = vmax.f32 %v581, 0.0
      %v618 = vmax.f32 %v586, 0.0
      %v619 = vmax.f32 %v589, 0.0
      %v620 = vmax.f32 %v594, 0.0
      %v621 = vmax.f32 %v597, 0.0
      %v622 = vmax.f32 %v602, 0.0
      %v623 = vmax.f32 %v605, 0.0
      %v624 = vpack.c.bf16 %v609, %v608
      %v625 = vpack.c.bf16 %v611, %v610
      %v626 = vpack.c.bf16 %v613, %v612
      %v627 = vpack.c.bf16 %v615, %v614
      %v628 = vpack.c.bf16 %v617, %v616
      %v629 = vpack.c.bf16 %v619, %v618
      %v630 = vpack.c.bf16 %v621, %v620
      %v631 = vpack.c.bf16 %v623, %v622
      %v632 = vld [vmem:[#allocation12] sm:$0xf]
      %v633 = vld [vmem:[#allocation12 + $0x4] sm:$0xf]
      %v634 = vld [vmem:[#allocation12 + $0x8] sm:$0xf]
      %v635 = vld [vmem:[#allocation12 + $0xc] sm:$0xf]
      %v636 = vld [vmem:[#allocation12 + $0x10] sm:$0xf]
      %v637 = vld [vmem:[#allocation12 + $0x14] sm:$0xf]
      %v638 = vld [vmem:[#allocation12 + $0x18] sm:$0xf]
      %v639 = vld [vmem:[#allocation12 + $0x1c] sm:$0xf]
      %v640 = vld [vmem:[#allocation12 + $0x20] sm:$0xf]
      %v641 = vld [vmem:[#allocation12 + $0x24] sm:$0xf]
      %v642 = vld [vmem:[#allocation12 + $0x28] sm:$0xf]
      %v643 = vld [vmem:[#allocation12 + $0x2c] sm:$0xf]
      %v644 = vld [vmem:[#allocation12 + $0x30] sm:$0xf]
      %v645 = vld [vmem:[#allocation12 + $0x34] sm:$0xf]
      %v646 = vld [vmem:[#allocation12 + $0x38] sm:$0xf]
      %v647 = vld [vmem:[#allocation12 + $0x3c] sm:$0xf]
      %v648 = vld [vmem:[%s6] sm:$0x1]
      %v650 = vlaneseq
      %v651 = vshrl.u32 %v650, 7
      %v652 = vsub.s32 0, %v651
      %v653 = vrot.slane %v648, %v652
      %v671 = vunpack.c.l.b16 %v632
      %v672 = vunpack.c.l.b16 %v633
      %v673 = vunpack.c.l.b16 %v634
      %v674 = vunpack.c.l.b16 %v635
      %v675 = vunpack.c.l.b16 %v636
      %v676 = vunpack.c.l.b16 %v637
      %v677 = vunpack.c.l.b16 %v638
      %v678 = vunpack.c.l.b16 %v639
      %v679 = vunpack.c.l.b16 %v640
      %v680 = vunpack.c.l.b16 %v641
      %v681 = vunpack.c.l.b16 %v642
      %v682 = vunpack.c.l.b16 %v643
      %v683 = vunpack.c.l.b16 %v644
      %v684 = vunpack.c.l.b16 %v645
      %v685 = vunpack.c.l.b16 %v646
      %v686 = vunpack.c.l.b16 %v647
      %v687 = vpack.c.b16 %v672, %v671
      %v688 = vpack.c.b16 %v674, %v673
      %v689 = vpack.c.b16 %v676, %v675
      %v690 = vpack.c.b16 %v678, %v677
      %v691 = vpack.c.b16 %v680, %v679
      %v692 = vpack.c.b16 %v682, %v681
      %v693 = vpack.c.b16 %v684, %v683
      %v694 = vpack.c.b16 %v686, %v685
      %703 = vmatprep.subr.bf16.mxu0 0
      %704 = vmatpush1.bf16.msra.mxu0 %v687
      %705 = vmatprep.subr.bf16.mxu0 0
      %706 = vmatpush1.bf16.msra.mxu0 %v688
      %707 = vmatprep.subr.bf16.mxu0 0
      %708 = vmatpush1.bf16.msra.mxu0 %v689
      %709 = vmatprep.subr.bf16.mxu0 0
      %710 = vmatpush1.bf16.msra.mxu0 %v690
      %711 = vmatprep.subr.bf16.mxu0 0
      %712 = vmatpush1.bf16.msra.mxu0 %v691
      %713 = vmatprep.subr.bf16.mxu0 0
      %714 = vmatpush1.bf16.msra.mxu0 %v692
      %715 = vmatprep.subr.bf16.mxu0 0
      %716 = vmatpush1.bf16.msra.mxu0 %v693
      %717 = vmatprep.subr.bf16.mxu0 0
      %718 = vmatpush1.bf16.msra.mxu0 %v694
      %719 = vmatprep.subr.bf16.mxu0 0
      %720 = vmatpush1.bf16.msra.mxu0 0
      %721 = vmatprep.subr.bf16.mxu0 0
      %722 = vmatpush1.bf16.msra.mxu0 0
      %723 = vmatprep.subr.bf16.mxu0 0
      %724 = vmatpush1.bf16.msra.mxu0 0
      %725 = vmatprep.subr.bf16.mxu0 0
      %726 = vmatpush1.bf16.msra.mxu0 0
      %727 = vmatprep.subr.bf16.mxu0 0
      %728 = vmatpush1.bf16.msra.mxu0 0
      %729 = vmatprep.subr.bf16.mxu0 0
      %730 = vmatpush1.bf16.msra.mxu0 0
      %731 = vmatprep.subr.bf16.mxu0 0
      %732 = vmatpush1.bf16.msra.mxu0 0
      %733 = vmatprep.subr.bf16.mxu0 0
      %734 = vmatpush1.bf16.msra.mxu0 0
      %735 = vmatprep.mubr.bf16.mxu0 0
      %736 = vmatmul.mubr.bf16.gmra.mrb[0].mxu0 %v624
      %v737 = vpop.f32.mrb[0].mxu0
      %v738 = vadd.f32 %v653, %v737
      %v739 = vpop.f32.mrb[0].mxu0
      %v740 = vpop.f32.mrb[0].mxu0
      %v741 = vadd.f32 %v653, %v740
      %v742 = vpop.f32.mrb[0].mxu0
      %743 = vmatprep.mubr.bf16.mxu0 0
      %744 = vmatmul.mubr.bf16.gmra.mrb[0].mxu0 %v625
      %v745 = vpop.f32.mrb[0].mxu0
      %v746 = vadd.f32 %v653, %v745
      %v747 = vpop.f32.mrb[0].mxu0
      %v748 = vpop.f32.mrb[0].mxu0
      %v749 = vadd.f32 %v653, %v748
      %v750 = vpop.f32.mrb[0].mxu0
      %751 = vmatprep.mubr.bf16.mxu0 0
      %752 = vmatmul.mubr.bf16.gmra.mrb[0].mxu0 %v626
      %v753 = vpop.f32.mrb[0].mxu0
      %v754 = vadd.f32 %v653, %v753
      %v755 = vpop.f32.mrb[0].mxu0
      %v756 = vpop.f32.mrb[0].mxu0
      %v757 = vadd.f32 %v653, %v756
      %v758 = vpop.f32.mrb[0].mxu0
      %759 = vmatprep.mubr.bf16.mxu0 0
      %760 = vmatmul.mubr.bf16.gmra.mrb[0].mxu0 %v627
      %v761 = vpop.f32.mrb[0].mxu0
      %v762 = vadd.f32 %v653, %v761
      %v763 = vpop.f32.mrb[0].mxu0
      %v764 = vpop.f32.mrb[0].mxu0
      %v765 = vadd.f32 %v653, %v764
      %v766 = vpop.f32.mrb[0].mxu0
      %767 = vmatprep.mubr.bf16.mxu0 0
      %768 = vmatmul.mubr.bf16.gmra.mrb[0].mxu0 %v628
      %v769 = vpop.f32.mrb[0].mxu0
      %v770 = vadd.f32 %v653, %v769
      %v771 = vpop.f32.mrb[0].mxu0
      %v772 = vpop.f32.mrb[0].mxu0
      %v773 = vadd.f32 %v653, %v772
      %v774 = vpop.f32.mrb[0].mxu0
      %775 = vmatprep.mubr.bf16.mxu0 0
      %776 = vmatmul.mubr.bf16.gmra.mrb[0].mxu0 %v629
      %v777 = vpop.f32.mrb[0].mxu0
      %v778 = vadd.f32 %v653, %v777
      %v779 = vpop.f32.mrb[0].mxu0
      %v780 = vpop.f32.mrb[0].mxu0
      %v781 = vadd.f32 %v653, %v780
      %v782 = vpop.f32.mrb[0].mxu0
      %783 = vmatprep.mubr.bf16.mxu0 0
      %784 = vmatmul.mubr.bf16.gmra.mrb[0].mxu0 %v630
      %v785 = vpop.f32.mrb[0].mxu0
      %v786 = vadd.f32 %v653, %v785
      %v787 = vpop.f32.mrb[0].mxu0
      %v788 = vpop.f32.mrb[0].mxu0
      %v789 = vadd.f32 %v653, %v788
      %v790 = vpop.f32.mrb[0].mxu0
      %791 = vmatprep.mubr.bf16.mxu0 0
      %792 = vmatmul.mubr.bf16.gmra.mrb[0].mxu0 %v631
      %v793 = vpop.f32.mrb[0].mxu0
      %v794 = vadd.f32 %v653, %v793
      %v795 = vpop.f32.mrb[0].mxu0
      %v796 = vpop.f32.mrb[0].mxu0
      %v797 = vadd.f32 %v653, %v796
      %v798 = vpop.f32.mrb[0].mxu0
      %799 = vdwg.mxu0
      %v800 = vmax.f32 %v738, 0.0
      %v801 = vmax.f32 %v741, 0.0
      %v802 = vmax.f32 %v746, 0.0
      %v803 = vmax.f32 %v749, 0.0
      %v804 = vmax.f32 %v754, 0.0
      %v805 = vmax.f32 %v757, 0.0
      %v806 = vmax.f32 %v762, 0.0
      %v807 = vmax.f32 %v765, 0.0
      %v808 = vmax.f32 %v770, 0.0
      %v809 = vmax.f32 %v773, 0.0
      %v810 = vmax.f32 %v778, 0.0
      %v811 = vmax.f32 %v781, 0.0
      %v812 = vmax.f32 %v786, 0.0
      %v813 = vmax.f32 %v789, 0.0
      %v814 = vmax.f32 %v794, 0.0
      %v815 = vmax.f32 %v797, 0.0
      %v816 = vpack.c.bf16 %v801, %v800
      %v817 = vpack.c.bf16 %v803, %v802
      %v818 = vpack.c.bf16 %v805, %v804
      %v819 = vpack.c.bf16 %v807, %v806
      %v820 = vpack.c.bf16 %v809, %v808
      %v821 = vpack.c.bf16 %v811, %v810
      %v822 = vpack.c.bf16 %v813, %v812
      %v823 = vpack.c.bf16 %v815, %v814
      %v832 = vunpack.c.l.b16 %v816
      %v833 = vunpack.c.h.b16 %v816
      %v834 = vunpack.c.l.b16 %v817
      %v835 = vunpack.c.h.b16 %v817
      %v836 = vunpack.c.l.b16 %v818
      %v837 = vunpack.c.h.b16 %v818
      %v838 = vunpack.c.l.b16 %v819
      %v839 = vunpack.c.h.b16 %v819
      %v840 = vunpack.c.l.b16 %v820
      %v841 = vunpack.c.h.b16 %v820
      %v842 = vunpack.c.l.b16 %v821
      %v843 = vunpack.c.h.b16 %v821
      %v844 = vunpack.c.l.b16 %v822
      %v845 = vunpack.c.h.b16 %v822
      %v846 = vunpack.c.l.b16 %v823
      %v847 = vunpack.c.h.b16 %v823
      %v848 = vpack.c.b16 %v832, %v832
      %v849 = vpack.c.b16 %v833, %v833
      %v850 = vpack.c.b16 %v834, %v834
      %v851 = vpack.c.b16 %v835, %v835
      %v852 = vpack.c.b16 %v836, %v836
      %v853 = vpack.c.b16 %v837, %v837
      %v854 = vpack.c.b16 %v838, %v838
      %v855 = vpack.c.b16 %v839, %v839
      %v856 = vpack.c.b16 %v840, %v840
      %v857 = vpack.c.b16 %v841, %v841
      %v858 = vpack.c.b16 %v842, %v842
      %v859 = vpack.c.b16 %v843, %v843
      %v860 = vpack.c.b16 %v844, %v844
      %v861 = vpack.c.b16 %v845, %v845
      %v862 = vpack.c.b16 %v846, %v846
      %v863 = vpack.c.b16 %v847, %v847
      %880 = vst [vmem:[#allocation13] sm:$0xf] %v848
      %881 = vst [vmem:[#allocation13 + $0x4] sm:$0xf] %v849
      %882 = vst [vmem:[#allocation13 + $0x8] sm:$0xf] %v850
      %883 = vst [vmem:[#allocation13 + $0xc] sm:$0xf] %v851
      %884 = vst [vmem:[#allocation13 + $0x10] sm:$0xf] %v852
      %885 = vst [vmem:[#allocation13 + $0x14] sm:$0xf] %v853
      %886 = vst [vmem:[#allocation13 + $0x18] sm:$0xf] %v854
      %887 = vst [vmem:[#allocation13 + $0x1c] sm:$0xf] %v855
      %888 = vst [vmem:[#allocation13 + $0x20] sm:$0xf] %v856
      %889 = vst [vmem:[#allocation13 + $0x24] sm:$0xf] %v857
      %890 = vst [vmem:[#allocation13 + $0x28] sm:$0xf] %v858
      %891 = vst [vmem:[#allocation13 + $0x2c] sm:$0xf] %v859
      %892 = vst [vmem:[#allocation13 + $0x30] sm:$0xf] %v860
      %893 = vst [vmem:[#allocation13 + $0x34] sm:$0xf] %v861
      %894 = vst [vmem:[#allocation13 + $0x38] sm:$0xf] %v862
      %895 = vst [vmem:[#allocation13 + $0x3c] sm:$0xf] %v863
    $region61: #{tpu_custom_call.1} parent=1 // pred_fallthru
      _
    // Predicated region
    $region62: #{tpu_custom_call.1} parent=1 // pred_check
      _
    $region63: #{tpu_custom_call.1} parent=1 // pred_check_branch
      %897 = sbr.rel (0) target = $region65
    $region64: #{tpu_custom_call.1} parent=1 // pred_region
      %s899 = ssub.s32 1024, 1024
      %900 = vsyncadd [#allocation6], %s899
      %s901 = sshll.u32 [#allocation13], 4
      %s902 = int_to_ptr.vmem [resolvable:$true] %s901
      %907 = dma.vmem_to_hbm [thread:$0]  %s902, 1024, %s8, [#allocation6], 64, 64, 4
    $region65: #{tpu_custom_call.1} parent=1 // pred_fallthru
      _
    // Predicated region
    $region66: #{tpu_custom_call.1} parent=1 // pred_check
      _
    $region67: #{tpu_custom_call.1} parent=1 // pred_check_branch
      %909 = sbr.rel (0) target = $region69
    $region68: #{tpu_custom_call.1} parent=1 // pred_region
      %910 = dma.done [#allocation6], 1024
    $region69: #{tpu_custom_call.1} parent=1 // pred_fallthru
      _
    %911 = vsyncpa [#allocation5], 1
    %912 = vsyncpa [#allocation8], 1
    %913 = vsyncpa [#allocation11], 1
    %914 = vsyncpa [#allocation6], 1

</llo_original>
